<compile_context>
chip_gen: v7x
topology: tpu7x:2x2x1
jax: 0.10.0
libtpu: 0.0.40
codegen_flags: <defaults>
</compile_context>

<pallas_src>
import functools

import jax
import jax.numpy as jnp
from jax.experimental import pallas as pl
from jax.experimental.pallas import tpu as pltpu


def _pact_kernel(params_ref, x_ref, o_ref, *, nbit):
    """y = clamp(x, 0, alpha); out = y if nbit==32 else round(y*scale)/scale."""
    x = x_ref[...]
    cdt = x.dtype
    alpha = params_ref[0]                       # f32 scalar from SMEM
    if cdt != jnp.float32:
        # Splat to a (1,1) f32 vector first, then cast as a *vector* op.
        # Avoids sub-32-bit scalar conversions on the scalar core; Mosaic keeps
        # the splat replicated in a single vreg.
        alpha = jnp.broadcast_to(alpha, (1, 1)).astype(cdt)
    # Clamp in the native dtype (bf16 stays packed [16,128]; f32 unchanged).
    clamped = jnp.minimum(jnp.maximum(x, 0.0), alpha)
    if nbit == 32:
        o_ref[...] = clamped.astype(o_ref.dtype)
    else:
        scale = params_ref[1]                   # f32, hoisted to the wrapper
        inv_scale = params_ref[2]               # f32, hoisted to the wrapper
        # Level selection in f32 => exact level assignment vs the f32 reference
        # (only mul + round + mul run at f32 width).
        lvl = jnp.round(clamped.astype(jnp.float32) * scale)
        o_ref[...] = (lvl * inv_scale).astype(o_ref.dtype)


_LANE = 128
_MAX_LANES = 1024
_TARGET_BLOCK_BYTES = 4 * 1024 * 1024      # ~4 MiB per block
_VMEM_LIMIT_BYTES = 40 * 1024 * 1024       # in+out double-buffered (~16 MiB) + headroom


def pact_forward(x, nbit_a, alpha):
    """PACT forward. x: any shape (e.g. NCHW), alpha: scalar, nbit_a: python int."""
    x = jnp.asarray(x)
    orig_shape, orig_dtype = x.shape, x.dtype
    n = int(x.size)
    if n == 0:
        return x
    itemsize = jnp.dtype(orig_dtype).itemsize
    nbit_a = int(nbit_a)

    # Scalar parameters (SMEM): [alpha, scale, 1/scale], all f32.  Hoisted here
    # so the kernel does no per-step scalar divides.
    alpha_f = jnp.asarray(alpha, jnp.float32).reshape(())
    if nbit_a == 32:
        scale = jnp.float32(1.0)
        inv_scale = jnp.float32(1.0)
    else:
        levels = jnp.float32(2.0 ** nbit_a - 1.0)
        scale = levels / alpha_f
        inv_scale = alpha_f / levels
    params = jnp.stack([alpha_f, scale, inv_scale])

    # ---- choose a lane-dense 2-D view of the flat element stream (free reshape) ----
    pad = 0
    if n % _LANE == 0:
        lanes = _MAX_LANES                 # widest of 1024/512/256/128 dividing n
        while n % lanes:
            lanes //= 2
    else:
        last = int(orig_shape[-1]) if x.ndim else 1
        if last * itemsize <= _TARGET_BLOCK_BYTES:
            lanes = last                   # full-extent last dim: always a legal block dim
        else:
            # TODO(synk): huge lane-unaligned last dim -- pad/slice costs two extra
            # HBM passes; replace with a ragged manual-DMA path if this is ever hit.
            lanes = _LANE
            pad = (-n) % _LANE

    flat = x.reshape(-1)
    if pad:
        flat = jnp.pad(flat, (0, pad))
    rows = (n + pad) // lanes
    x2d = flat.reshape(rows, lanes)

    # ---- row tile: ~4 MiB blocks, >= 2 grid steps when possible (v7x megacore) ----
    sub_min = {4: 8, 2: 16, 1: 32}.get(itemsize, 8)     # sublane packing per dtype
    target_rows = max(sub_min,
                      (_TARGET_BLOCK_BYTES // (lanes * itemsize)) // sub_min * sub_min)
    if rows <= sub_min:
        row_tile = rows                                  # single full-extent block
    else:
        half = -(-rows // 2)                             # ceil(rows / 2)
        half = ((half + sub_min - 1) // sub_min) * sub_min
        row_tile = min(target_rows, half)
    grid = (pl.cdiv(rows, row_tile),)

    out2d = pl.pallas_call(
        functools.partial(_pact_kernel, nbit=nbit_a),
        out_shape=jax.ShapeDtypeStruct((rows, lanes), orig_dtype),
        grid=grid,
        in_specs=[
            pl.BlockSpec(memory_space=pltpu.MemorySpace.SMEM),   # [alpha, scale, 1/scale]
            pl.BlockSpec((row_tile, lanes), lambda i: (i, 0)),   # x tile
        ],
        out_specs=pl.BlockSpec((row_tile, lanes), lambda i: (i, 0)),
        compiler_params=pltpu.CompilerParams(
            dimension_semantics=("parallel",),
            vmem_limit_bytes=_VMEM_LIMIT_BYTES),
    )(params, x2d)

    out_flat = out2d.reshape(-1)
    if pad:
        out_flat = out_flat[:n]
    return out_flat.reshape(orig_shape)


if __name__ == "__main__":
    key = jax.random.PRNGKey(0)
    # NCHW activations, consistent with conv-style inputs PACT is applied to.
    x = jax.random.normal(key, (2, 4, 16, 16), dtype=jnp.float32)

    alpha = jnp.float32(6.0)     # PACT clipping level (nn.Parameter in torch)
    nbit_a = 4
    levels = float(2 ** nbit_a - 1)

    out = pact_forward(x, nbit_a, alpha)
    jax.block_until_ready(out)

    scale = levels / alpha
    ref = jnp.round(jnp.clip(x, 0.0, alpha) * scale) / scale
    assert out.shape == x.shape and out.dtype == x.dtype
    assert jnp.allclose(out, ref, atol=1e-5), "mismatch vs reference (nbit=4)"

    # nbit == 32 passthrough (clamp only).
    out32 = pact_forward(x, 32, alpha)
    jax.block_until_ready(out32)
    assert jnp.allclose(out32, jnp.clip(x, 0.0, alpha), atol=1e-6), "nbit=32 path mismatch"

    # bf16 activations stay bf16 end-to-end (half the HBM bytes); clamp runs in
    # bf16, level selection in f32 (matches the f32 reference levels).
    xb = x.astype(jnp.bfloat16)
    outb = pact_forward(xb, nbit_a, alpha)
    jax.block_until_ready(outb)
    assert outb.dtype == jnp.bfloat16
    yb = jnp.clip(xb.astype(jnp.float32), 0.0, alpha)
    refb = (jnp.round(yb * (levels / alpha)) * (alpha / levels)).astype(jnp.bfloat16)
    assert jnp.allclose(outb.astype(jnp.float32), refb.astype(jnp.float32),
                        atol=2e-2), "bf16 path mismatch"

    # Aligned multi-block path (grid >= 2 steps, lane-dense 1024-wide view).
    xm = jax.random.normal(jax.random.PRNGKey(2), (4, 8, 32, 32), dtype=jnp.float32)
    outm = pact_forward(xm, nbit_a, alpha)
    jax.block_until_ready(outm)
    refm = jnp.round(jnp.clip(xm, 0.0, alpha) * scale) / scale
    assert jnp.allclose(outm, refm, atol=1e-5), "aligned multi-block mismatch"

    # Lane-unaligned element count: full-extent last dim, no pad/slice passes.
    xu = jax.random.normal(jax.random.PRNGKey(1), (3, 5, 7, 11), dtype=jnp.float32)
    outu = pact_forward(xu, nbit_a, alpha)
    jax.block_until_ready(outu)
    refu = jnp.round(jnp.clip(xu, 0.0, alpha) * scale) / scale
    assert jnp.allclose(outu, refu, atol=1e-5), "unaligned-shape mismatch"

    print("KERNEL_OK")
</pallas_src>

<mosaic_0001>
module attributes {stable_mosaic.version = 11 : i64} {
  func.func @_pact_kernel(%arg0: i32, %arg1: memref<3xf32, #tpu.memory_space<smem>>, %arg2: memref<2x1024xf32, #tpu.memory_space<vmem>>, %arg3: memref<2x1024xf32, #tpu.memory_space<vmem>>) attributes {dimension_semantics = [#tpu.dimension_semantics<parallel>], iteration_bounds = array<i64: 1>, scalar_prefetch = 0 : i64, scratch_operands = 0 : i64, tpu.core_type = #tpu.core_type<tc>, window_params = [{transform_indices = @transform_0, window_bounds = array<i64: 3>}, {transform_indices = @transform_1, window_bounds = array<i64: 2, 1024>}, {transform_indices = @transform_2, window_bounds = array<i64: 2, 1024>}]} {
    %c0 = arith.constant 0 : index
    %c0_0 = arith.constant 0 : index
    %0 = vector.load %arg2[%c0, %c0_0] : memref<2x1024xf32, #tpu.memory_space<vmem>>, vector<2x1024xf32>
    %c0_1 = arith.constant 0 : index
    %1 = memref.load %arg1[%c0_1] : memref<3xf32, #tpu.memory_space<smem>>
    %cst = arith.constant 0.000000e+00 : f32
    %2 = vector.broadcast %cst : f32 to vector<2x1024xf32>
    %3 = arith.maximumf %0, %2 : vector<2x1024xf32>
    %4 = vector.broadcast %1 : f32 to vector<2x1024xf32>
    %5 = arith.minimumf %3, %4 : vector<2x1024xf32>
    %c1 = arith.constant 1 : index
    %6 = memref.load %arg1[%c1] : memref<3xf32, #tpu.memory_space<smem>>
    %c2 = arith.constant 2 : index
    %7 = memref.load %arg1[%c2] : memref<3xf32, #tpu.memory_space<smem>>
    %8 = vector.broadcast %6 : f32 to vector<2x1024xf32>
    %9 = arith.mulf %5, %8 : vector<2x1024xf32>
    %10 = math.roundeven %9 : vector<2x1024xf32>
    %11 = vector.broadcast %7 : f32 to vector<2x1024xf32>
    %12 = arith.mulf %10, %11 : vector<2x1024xf32>
    %c0_2 = arith.constant 0 : index
    %c0_3 = arith.constant 0 : index
    %13 = vector.load %arg3[%c0_2, %c0_3] : memref<2x1024xf32, #tpu.memory_space<vmem>>, vector<2x1024xf32>
    tpu.vector_store %arg3[%c0_2, %c0_3], %12 {strides = array<i32>} : memref<2x1024xf32, #tpu.memory_space<vmem>>, vector<2x1024xf32>,
    return
  }
  func.func @transform_0(%arg0: i32) -> i32 {
    %c0_i32 = arith.constant 0 : i32
    %c0_i32_0 = arith.constant 0 : i32
    return %c0_i32 : i32
  }
  func.func @transform_1(%arg0: i32) -> (i32, i32) {
    %c0_i32 = arith.constant 0 : i32
    %c0_i32_0 = arith.constant 0 : i32
    return %arg0, %c0_i32 : i32, i32
  }
  func.func @transform_2(%arg0: i32) -> (i32, i32) {
    %c0_i32 = arith.constant 0 : i32
    %c0_i32_0 = arith.constant 0 : i32
    return %arg0, %c0_i32 : i32, i32
  }
}

</mosaic_0001>

<llo_original>
// kernel: tpu_custom_call.1
$region0: #{tpu_custom_call.1}
  #allocation0 [shape = 'u32[]', space=smem, size = 0x4, offset = 0x4, fixed_abs, tag = 'smem constant byte address 0x4 - core index']
  #allocation1 [shape = 'u32[144,128]{1,0:T(1,128)}', space=vmem, size = 0x12000, scoped, tag = 'internal scratch']
  %s0 = inlined_call_operand.hbm [shape: f32[3], index: 0, kind: input, shape index: {}]
  %s1 = inlined_call_operand.hbm [shape: f32[2,1024], index: 1, kind: input, shape index: {}]
  %s2 = inlined_call_operand.hbm [shape: f32[2,1024], index: 2, kind: output, shape index: {}]
  %s3 = sld [smem:[#allocation0]]
  $region26: #{tpu_custom_call.1} parent=0
    _
  %s5 = ssub.s32 1, %s3
  %s6 = scalar_select 0, %s5, %s3
  $region1: #{tpu_custom_call.1} parent=0
    #allocation2 [shape = 'u8[512]{0}', space=smem, size = 0x200, scoped, tag = 'input window, operand 0, single buffered']
    #allocation3 [shape = 's32[1]{0}', space=sflag, size = 0x4, scoped, tag = 'scoped memory for tpu_custom_call.1']
    #allocation4 [shape = 's32[1]{0}', space=sflag, size = 0x4, scoped, tag = 'scoped memory for tpu_custom_call.1']
    #allocation5 [shape = 's32[1]{0}', space=sflag, size = 0x4, scoped, tag = 'scoped memory for tpu_custom_call.1']
    #allocation6 [shape = 'u8[8192]{0}', space=vmem, size = 0x2000, scoped, tag = 'input window, operand 1, single buffered']
    #allocation7 [shape = 'u8[8192]{0}', space=vmem, size = 0x2000, scoped, tag = 'output window, operand 0, single buffered']
    %7 = vsyncpa [#allocation5], 0
    %8 = vsyncpa [#allocation3], 0
    %9 = vsyncpa [#allocation4], 0
    // Predicated region
    $region2: #{tpu_custom_call.1} parent=1 // pred_check
      _
    $region3: #{tpu_custom_call.1} parent=1 // pred_check_branch
      %11 = sbr.rel (0) target = $region5
    $region4: #{tpu_custom_call.1} parent=1 // pred_region
      %s13 = ssub.s32 16, 16
      %14 = vsyncadd [#allocation5], %s13
      %17 = dma.hbm_to_smem %s0, 16, [#allocation2], [#allocation5]
    $region5: #{tpu_custom_call.1} parent=1 // pred_fallthru
      _
    // Predicated region
    $region6: #{tpu_custom_call.1} parent=1 // pred_check
      _
    $region7: #{tpu_custom_call.1} parent=1 // pred_check_branch
      %19 = sbr.rel (0) target = $region9
    $region8: #{tpu_custom_call.1} parent=1 // pred_region
      %s21 = ssub.s32 256, 256
      %22 = vsyncadd [#allocation3], %s21
      %s24 = sshll.u32 [#allocation6], 4
      %s25 = int_to_ptr.vmem [resolvable:$true] %s24
      %27 = dma.hbm_to_vmem [thread:$0]  %s1, 256, %s25, [#allocation3]
    $region9: #{tpu_custom_call.1} parent=1 // pred_fallthru
      _
    // Predicated region
    $region10: #{tpu_custom_call.1} parent=1 // pred_check
      _
    $region11: #{tpu_custom_call.1} parent=1 // pred_check_branch
      %29 = sbr.rel (0) target = $region13
    $region12: #{tpu_custom_call.1} parent=1 // pred_region
      %30 = dma.done [#allocation5], 16
    $region13: #{tpu_custom_call.1} parent=1 // pred_fallthru
      _
    // Predicated region
    $region14: #{tpu_custom_call.1} parent=1 // pred_check
      _
    $region15: #{tpu_custom_call.1} parent=1 // pred_check_branch
      %32 = sbr.rel (0) target = $region17
    $region16: #{tpu_custom_call.1} parent=1 // pred_region
      %33 = dma.done [#allocation3], 256
    $region17: #{tpu_custom_call.1} parent=1 // pred_fallthru
      _
    %34 = sfence
    %v35 = vld [vmem:[#allocation6] sm:$0xff]
    %v36 = vld [vmem:[#allocation6 + $0x8] sm:$0xff]
    %s37 = sld [smem:[#allocation2]]
    %v38 = vmax.f32 %v35, 0.0
    %v39 = vmax.f32 %v36, 0.0
    %v40 = vstv %s37
    %v41 = vmin.f32 %v38, %v40
    %v42 = vmin.f32 %v39, %v40
    %s43 = sld [smem:[#allocation2 + $0x1]]
    %s44 = sld [smem:[#allocation2 + $0x2]]
    %v45 = vstv %s43
    %v46 = vmul.f32 %v41, %v45
    %v47 = vmul.f32 %v42, %v45
    %v48 = vround.ne.pseudo %v46
    %v49 = vround.ne.pseudo %v47
    %v50 = vstv %s44
    %v51 = vmul.f32 %v48, %v50
    %v52 = vmul.f32 %v49, %v50
    %53 = vst [vmem:[#allocation7] sm:$0xff] %v51
    %54 = vst [vmem:[#allocation7 + $0x8] sm:$0xff] %v52
    // Predicated region
    $region18: #{tpu_custom_call.1} parent=1 // pred_check
      _
    $region19: #{tpu_custom_call.1} parent=1 // pred_check_branch
      %56 = sbr.rel (0) target = $region21
    $region20: #{tpu_custom_call.1} parent=1 // pred_region
      %s58 = ssub.s32 256, 256
      %59 = vsyncadd [#allocation4], %s58
      %s61 = sshll.u32 [#allocation7], 4
      %s62 = int_to_ptr.vmem [resolvable:$true] %s61
      %64 = dma.vmem_to_hbm [thread:$0]  %s62, 256, %s2, [#allocation4]
    $region21: #{tpu_custom_call.1} parent=1 // pred_fallthru
      _
    // Predicated region
    $region22: #{tpu_custom_call.1} parent=1 // pred_check
      _
    $region23: #{tpu_custom_call.1} parent=1 // pred_check_branch
      %66 = sbr.rel (0) target = $region25
    $region24: #{tpu_custom_call.1} parent=1 // pred_region
      %67 = dma.done [#allocation4], 256
    $region25: #{tpu_custom_call.1} parent=1 // pred_fallthru
      _
    %68 = vsyncpa [#allocation3], 1
    %69 = vsyncpa [#allocation4], 1
    %70 = vsyncpa [#allocation5], 1

</llo_original>
